<compile_context>
chip_gen: v5e
topology: v5e:2x2
jax: 0.10.0
libtpu: 0.0.40
codegen_flags: <defaults>
</compile_context>

<pallas_src>
import jax
import jax.numpy as jnp
from jax.experimental import pallas as pl
from jax.experimental.pallas import tpu as pltpu

_LANES = 128
_TARGET_TILE_BYTES = 2 * 1024 * 1024      # ~2 MiB per input tile (x2 for double-buffering)
_NUM_SPLITS = 2                           # leading "parallel" axis; shards across TCs on v7x
_SMALL_FASTPATH_ELEMS = 1 << 17           # below this, a fused XLA reduction is faster


def _make_sumsq_kernel(valid_rows, tile_rows, tiles_per_split, needs_mask):
    """Kernel: per-split partial sums of g^2 accumulated into an (8,128) f32 vreg."""

    def kernel(g_ref, out_ref, acc_ref):
        c = pl.program_id(0)      # split index ("parallel", -> per-TC on v7x)
        i = pl.program_id(1)      # row-tile index within the split ("arbitrary" reduction)

        @pl.when(i == 0)
        def _init():
            acc_ref[...] = jnp.zeros_like(acc_ref)

        x = g_ref[...].astype(jnp.float32)                       # (tile_rows, 128)
        if needs_mask:
            # Logical (unclamped) first row of this tile; rows >= valid_rows are
            # undefined on TPU and must be zeroed before squaring.
            row0 = (c * tiles_per_split + i) * tile_rows
            local = jax.lax.broadcasted_iota(jnp.int32, (tile_rows, _LANES), 0)
            x = jnp.where(row0 + local < valid_rows, x, 0.0)

        # Pure VALU vreg adds: fold tile_rows/8 groups of (8,128) into the accumulator.
        x2 = (x * x).reshape(tile_rows // 8, 8, _LANES)
        acc_ref[...] += jnp.sum(x2, axis=0)

        @pl.when(i == pl.num_programs(1) - 1)
        def _finalize():
            out_ref[...] = acc_ref[...]

    return kernel


def _sum_sq_partials_pallas(g):
    """Per-split lane-wise partial sums of g**2, shape (_NUM_SPLITS*8, 128) f32."""
    gf = g.reshape(-1)
    s = gf.shape[0]
    itemsize = jnp.dtype(g.dtype).itemsize

    # Only pad the (<128-element) lane tail; never rewrite the whole gradient.
    rem = s % _LANES
    if rem:
        gf = jnp.pad(gf, (0, _LANES - rem))
    rows = gf.shape[0] // _LANES
    g2d = gf.reshape(rows, _LANES)                               # lane-dense layout

    # Native sublane packing: 8 rows (f32), 16 (bf16), 32 (int8/fp8).
    packing = max(8, (32 // (itemsize * 8)) * 8)
    tile_rows = max(packing,
                    (_TARGET_TILE_BYTES // (_LANES * itemsize)) // packing * packing)
    rows_up = (rows + packing - 1) // packing * packing
    tile_rows = min(tile_rows, rows_up)

    num_tiles = pl.cdiv(rows, tile_rows)
    tiles_per_split = pl.cdiv(num_tiles, _NUM_SPLITS)
    covered_rows = _NUM_SPLITS * tiles_per_split * tile_rows
    needs_mask = covered_rows != rows
    needs_clamp = _NUM_SPLITS * tiles_per_split != num_tiles

    if needs_clamp:
        # Tiles past the real extent re-read the last valid tile (cheap, at most
        # _NUM_SPLITS-1 extra tiles) and are fully zeroed by the in-kernel mask.
        in_index = lambda c, i: (jnp.minimum(c * tiles_per_split + i, num_tiles - 1), 0)
    else:
        in_index = lambda c, i: (c * tiles_per_split + i, 0)

    kernel = _make_sumsq_kernel(rows, tile_rows, tiles_per_split, needs_mask)

    out = pl.pallas_call(
        kernel,
        out_shape=jax.ShapeDtypeStruct((_NUM_SPLITS * 8, _LANES), jnp.float32),
        grid=(_NUM_SPLITS, tiles_per_split),
        in_specs=[pl.BlockSpec((tile_rows, _LANES), in_index)],
        out_specs=pl.BlockSpec((8, _LANES), lambda c, i: (c, 0)),
        scratch_shapes=[pltpu.VMEM((8, _LANES), jnp.float32)],
        compiler_params=pltpu.CompilerParams(
            dimension_semantics=("parallel", "arbitrary"),
        ),
        cost_estimate=pl.CostEstimate(
            flops=2 * rows * _LANES,
            transcendentals=0,
            bytes_accessed=rows * _LANES * itemsize + _NUM_SPLITS * 8 * _LANES * 4,
        ),
    )(g2d)
    return out


def _frobenius_norm_pallas(g, *, force_pallas=False):
    """sqrt(sum(g**2)) over an arbitrarily shaped array."""
    if (not force_pallas) and g.size < _SMALL_FASTPATH_ELEMS:
        # Tiny gradients: let XLA fuse the reduction into the VJP epilogue.
        gf = g.reshape(-1).astype(jnp.float32)
        return jnp.sqrt(jnp.sum(gf * gf))
    partials = _sum_sq_partials_pallas(g)
    return jnp.sqrt(jnp.sum(partials))


def contractive_loss(apply_fn, inputs, *, force_pallas=False):
    """JAX/Pallas equivalent of ContractiveLoss.forward.

    PyTorch: z.backward(ones_like(z)); loss = sqrt(sum(inputs.grad ** 2)).
    Here: grad = vjp(apply_fn, inputs)(ones_like(z)); loss = Pallas Frobenius norm.
    """
    z, vjp_fn = jax.vjp(apply_fn, inputs)
    (grad_inputs,) = vjp_fn(jnp.ones_like(z))
    return _frobenius_norm_pallas(grad_inputs, force_pallas=force_pallas)


def _contractive_loss_ref(apply_fn, inputs):
    """Pure-JAX reference mirroring the PyTorch forward."""
    z, vjp_fn = jax.vjp(apply_fn, inputs)
    (grad_inputs,) = vjp_fn(jnp.ones_like(z))
    return jnp.sqrt(jnp.sum(grad_inputs.astype(jnp.float32) ** 2))


if __name__ == "__main__":
    key = jax.random.PRNGKey(0)
    k1, k2, k3, k4, k5 = jax.random.split(key, 5)

    # Small shapes consistent with the module: image-like inputs, vector features z.
    B, C, H, W = 2, 4, 16, 16
    D_OUT = 32
    inputs = jax.random.normal(k1, (B, C, H, W), dtype=jnp.float32)
    w = jax.random.normal(k2, (C * H * W, D_OUT), dtype=jnp.float32) * 0.02
    b = jax.random.normal(k3, (D_OUT,), dtype=jnp.float32) * 0.02

    def encoder(x):
        # stand-in for the external network that links `inputs` to `z`
        return jnp.tanh(x.reshape(x.shape[0], -1) @ w + b)

    ref = _contractive_loss_ref(encoder, inputs)

    # Default dispatch: small gradient -> fused XLA fast path.
    loss = jax.block_until_ready(contractive_loss(encoder, inputs))
    assert jnp.allclose(loss, ref, rtol=1e-5, atol=1e-6), (loss, ref)

    # Same loss forced through the Pallas kernel (exercises clamp + mask paths).
    loss_p = jax.block_until_ready(contractive_loss(encoder, inputs, force_pallas=True))
    assert jnp.allclose(loss_p, ref, rtol=1e-5, atol=1e-6), (loss_p, ref)

    # Large f32 gradient: multi-tile, masked ragged tail, dual-split Pallas path.
    g_big = jax.random.normal(k4, (1_000_000,), dtype=jnp.float32)
    norm_big = jax.block_until_ready(_frobenius_norm_pallas(g_big))
    ref_big = jnp.sqrt(jnp.sum(g_big.astype(jnp.float32) ** 2))
    assert jnp.allclose(norm_big, ref_big, rtol=1e-4, atol=1e-5), (norm_big, ref_big)

    # bf16 gradient: exercises the 16-row sublane-packing tile path.
    g_bf16 = jax.random.normal(k5, (300_000,), dtype=jnp.bfloat16)
    norm_bf = jax.block_until_ready(_frobenius_norm_pallas(g_bf16))
    ref_bf = jnp.sqrt(jnp.sum(g_bf16.astype(jnp.float32) ** 2))
    assert jnp.allclose(norm_bf, ref_bf, rtol=1e-4, atol=1e-5), (norm_bf, ref_bf)

    print("KERNEL_OK")
</pallas_src>

<mosaic_0001>
module attributes {stable_mosaic.version = 11 : i64} {
  func.func @kernel(%arg0: i32, %arg1: i32, %arg2: memref<16x128xf32, #tpu.memory_space<vmem>>, %arg3: memref<8x128xf32, #tpu.memory_space<vmem>>, %arg4: memref<8x128xf32, #tpu.memory_space<vmem>>) attributes {dimension_semantics = [#tpu.dimension_semantics<parallel>, #tpu.dimension_semantics<arbitrary>], iteration_bounds = array<i64: 2, 1>, scalar_prefetch = 0 : i64, scratch_operands = 1 : i64, tpu.core_type = #tpu.core_type<tc>, window_params = [{transform_indices = @transform_0, window_bounds = array<i64: 16, 128>}, {transform_indices = @transform_1, window_bounds = array<i64: 8, 128>}]} {
    %c0_i32 = arith.constant 0 : i32
    %0 = arith.cmpi eq, %arg1, %c0_i32 : i32
    %1 = arith.extui %0 : i1 to i32
    %c0_i32_0 = arith.constant 0 : i32
    %2 = arith.cmpi ne, %1, %c0_i32_0 : i32
    scf.if %2 {
      %cst_10 = arith.constant 0.000000e+00 : f32
      %23 = vector.broadcast %cst_10 : f32 to vector<8x128xf32>
      %c0_11 = arith.constant 0 : index
      %c0_12 = arith.constant 0 : index
      %24 = vector.load %arg4[%c0_11, %c0_12] : memref<8x128xf32, #tpu.memory_space<vmem>>, vector<8x128xf32>
      tpu.vector_store %arg4[%c0_11, %c0_12], %23 {strides = array<i32>} : memref<8x128xf32, #tpu.memory_space<vmem>>, vector<8x128xf32>,
    } else {
    }
    %c0 = arith.constant 0 : index
    %c0_1 = arith.constant 0 : index
    %3 = vector.load %arg2[%c0, %c0_1] : memref<16x128xf32, #tpu.memory_space<vmem>>, vector<16x128xf32>
    %c1_i32 = arith.constant 1 : i32
    %4 = arith.muli %arg0, %c1_i32 : i32
    %5 = arith.addi %4, %arg1 : i32
    %c16_i32 = arith.constant 16 : i32
    %6 = arith.muli %5, %c16_i32 : i32
    %7 = tpu.iota {dimensions = array<i32: 0>} : vector<16x128xi32>
    %8 = vector.broadcast %6 : i32 to vector<16x128xi32>
    %9 = arith.addi %8, %7 : vector<16x128xi32>
    %c16_i32_2 = arith.constant 16 : i32
    %10 = vector.broadcast %c16_i32_2 : i32 to vector<16x128xi32>
    %11 = arith.cmpi slt, %9, %10 : vector<16x128xi32>
    %cst = arith.constant 0.000000e+00 : f32
    %12 = vector.broadcast %cst : f32 to vector<16x128xf32>
    %13 = arith.select %11, %3, %12 : vector<16x128xi1>, vector<16x128xf32>
    %14 = arith.mulf %13, %13 : vector<16x128xf32>
    %15 = vector.shape_cast %14 : vector<16x128xf32> to vector<2x8x128xf32>
    %c0_3 = arith.constant 0 : index
    %c0_4 = arith.constant 0 : index
    %16 = vector.load %arg4[%c0_3, %c0_4] : memref<8x128xf32, #tpu.memory_space<vmem>>, vector<8x128xf32>
    %cst_5 = arith.constant dense<0.000000e+00> : vector<8x128xf32>
    %17 = vector.multi_reduction <add>, %15, %cst_5 [0] : vector<2x8x128xf32> to vector<8x128xf32>
    %18 = arith.addf %16, %17 : vector<8x128xf32>
    %c0_6 = arith.constant 0 : index
    %c0_7 = arith.constant 0 : index
    %19 = vector.load %arg4[%c0_6, %c0_7] : memref<8x128xf32, #tpu.memory_space<vmem>>, vector<8x128xf32>
    tpu.vector_store %arg4[%c0_6, %c0_7], %18 {strides = array<i32>} : memref<8x128xf32, #tpu.memory_space<vmem>>, vector<8x128xf32>,
    %c0_i32_8 = arith.constant 0 : i32
    %20 = arith.cmpi eq, %arg1, %c0_i32_8 : i32
    %21 = arith.extui %20 : i1 to i32
    %c0_i32_9 = arith.constant 0 : i32
    %22 = arith.cmpi ne, %21, %c0_i32_9 : i32
    scf.if %22 {
      %c0_10 = arith.constant 0 : index
      %c0_11 = arith.constant 0 : index
      %23 = vector.load %arg4[%c0_10, %c0_11] : memref<8x128xf32, #tpu.memory_space<vmem>>, vector<8x128xf32>
      %c0_12 = arith.constant 0 : index
      %c0_13 = arith.constant 0 : index
      %24 = vector.load %arg3[%c0_12, %c0_13] : memref<8x128xf32, #tpu.memory_space<vmem>>, vector<8x128xf32>
      tpu.vector_store %arg3[%c0_12, %c0_13], %23 {strides = array<i32>} : memref<8x128xf32, #tpu.memory_space<vmem>>, vector<8x128xf32>,
    } else {
    }
    return
  }
  func.func @transform_0(%arg0: i32, %arg1: i32) -> (i32, i32) {
    %c1_i32 = arith.constant 1 : i32
    %0 = arith.muli %arg0, %c1_i32 : i32
    %1 = arith.addi %0, %arg1 : i32
    %c0_i32 = arith.constant 0 : i32
    %2 = arith.minsi %1, %c0_i32 : i32
    %c0_i32_0 = arith.constant 0 : i32
    %c0_i32_1 = arith.constant 0 : i32
    return %2, %c0_i32_0 : i32, i32
  }
  func.func @transform_1(%arg0: i32, %arg1: i32) -> (i32, i32) {
    %c0_i32 = arith.constant 0 : i32
    %c0_i32_0 = arith.constant 0 : i32
    return %arg0, %c0_i32 : i32, i32
  }
}

</mosaic_0001>

<llo_original>
// kernel: tpu_custom_call.1
$region0: #{tpu_custom_call.1}
  #allocation0 [shape = 'u32[]', space=smem, size = 0x4, offset = 0x4, fixed_abs, tag = 'smem constant byte address 0x4 - core index']
  #allocation1 [shape = 'u32[72,128]{1,0:T(1,128)}', space=vmem, size = 0x9000, scoped, tag = 'internal scratch']
  #allocation2 [shape = 'f32[8,128]{1,0:T(8,128)}', space=vmem, size = 0x1000, scoped, tag = 'scratch operand']
  %s0 = inlined_call_operand.hbm [shape: f32[16,128], index: 0, kind: input, shape index: {}]
  %s1 = inlined_call_operand.hbm [shape: f32[16,128], index: 1, kind: output, shape index: {}]
  %s2 = sld [smem:[#allocation0]]
  $region49: #{tpu_custom_call.1} parent=0
    _
  %s4 = ssub.s32 1, %s2
  %s5 = scalar_select 0, %s4, %s2
  $region1: #{tpu_custom_call.1} parent=0
    #allocation3 [shape = 'u8[16384]{0}', space=vmem, size = 0x4000, scoped, tag = 'input window, operand 0']
    #allocation4 [shape = 's32[2]{0}', space=sflag, size = 0x8, scoped, tag = 'scoped memory for tpu_custom_call.1']
    #allocation5 [shape = 's32[2]{0}', space=sflag, size = 0x8, scoped, tag = 'scoped memory for tpu_custom_call.1']
    #allocation6 [shape = 'u8[8192]{0}', space=vmem, size = 0x2000, scoped, tag = 'output window, operand 0']
    %6 = vsyncpa [#allocation4], 0
    %s7 = scalar_lea.sflag [#allocation4], 1
    %8 = vsyncpa %s7, 0
    %9 = vsyncpa [#allocation5], 0
    %s10 = scalar_lea.sflag [#allocation5], 1
    %11 = vsyncpa %s10, 0
    loop: start=0, step=1, limit=4
    $region2: #{tpu_custom_call.1} parent=1 // loop_pre_header
      _
    $region3: #{tpu_custom_call.1} parent=1 // loop_header
      %s13 = sphi 0, %s17
      %p14 = scmp.ge.s32.totalorder %s13, 4
      %s20 = sphi 0, %s32
      %s21 = sphi 0, %s28
      %s22 = sphi 0, %s20
      %s23 = sphi 0, %s21
      %s24 = sphi 0, %s22
      %s25 = sphi 0, %s23
      %s41 = sphi 0, %s43
      %s44 = sphi 0, %s41
      %s45 = sphi 0, %s44
      %s61 = sphi 0, %s45
      %s67 = sphi 0, %s69
      %s70 = sphi 0, %s67
      %s71 = sphi 0, %s70
      %s87 = sphi 0, %s71
    $region4: #{tpu_custom_call.1} parent=1 // loop_header_branch
      %16 = sbr.rel (%p14) target = $region8
    $region5: #{tpu_custom_call.1} parent=1 // loop_body
      %s18 = ssub.s32 %s13, 1
      %s19 = ssub.s32 %s13, 2
      %s26 = sadd.s32 1, %s21
      %p27 = scmp.ge.s32.totalorder %s26, 1
      %s28 = scalar_select %p27, 0, %s26
      %s29 = sadd.s32 1, %s20
      %s30 = scalar_select %p27, %s29, %s20
      %p31 = scmp.ge.s32.totalorder %s30, 2
      %s32 = scalar_select %p31, 0, %s30
      %s33 = sadd.s32 %s20, %s21
      %p34 = scmp.lt.s32.totalorder %s33, 0
      %s35 = scalar_select %p34, %s33, 0
      %s36 = sadd.s32 %s32, %s28
      %p37 = scmp.lt.s32.totalorder %s36, 0
      %s38 = scalar_select %p37, %s36, 0
      %s39 = ssub.s32 %s35, %s38
      %p40 = scmp.eq.s32.totalorder %s39, 0
      %s42 = sadd.s32 %s41, 1
      %s43 = scalar_select %p40, %s41, %s42
      %p46 = pneg %p40
      %p47 = scmp.eq.s32.totalorder %s13, 1
      %p48 = por %p46, %p47
      %p49 = scmp.ne.s32.totalorder %s41, %s44
      %p50 = scmp.eq.s32.totalorder %s13, 0
      %p51 = por %p49, %p50
      %p52 = scmp.ne.s32.totalorder %s41, %s44
      %p53 = scmp.eq.s32.totalorder %s18, 1
      %p54 = por %p52, %p53
      %p55 = scmp.ne.s32.totalorder %s44, %s45
      %p56 = scmp.eq.s32.totalorder %s18, 0
      %p57 = por %p55, %p56
      %p58 = scmp.ne.s32.totalorder %s44, %s45
      %p59 = scmp.eq.s32.totalorder %s19, 1
      %p60 = por %p58, %p59
      %p62 = scmp.ne.s32.totalorder %s45, %s61
      %p63 = scmp.eq.s32.totalorder %s19, 0
      %p64 = por %p62, %p63
      %s65 = ssub.s32 %s20, %s32
      %p66 = scmp.eq.s32.totalorder %s65, 0
      %s68 = sadd.s32 %s67, 1
      %s69 = scalar_select %p66, %s67, %s68
      %p72 = pneg %p66
      %p73 = scmp.eq.s32.totalorder %s13, 1
      %p74 = por %p72, %p73
      %p75 = scmp.ne.s32.totalorder %s67, %s70
      %p76 = scmp.eq.s32.totalorder %s13, 0
      %p77 = por %p75, %p76
      %p78 = scmp.ne.s32.totalorder %s67, %s70
      %p79 = scmp.eq.s32.totalorder %s18, 1
      %p80 = por %p78, %p79
      %p81 = scmp.ne.s32.totalorder %s70, %s71
      %p82 = scmp.eq.s32.totalorder %s18, 0
      %p83 = por %p81, %p82
      %p84 = scmp.ne.s32.totalorder %s70, %s71
      %p85 = scmp.eq.s32.totalorder %s19, 1
      %p86 = por %p84, %p85
      %p88 = scmp.ne.s32.totalorder %s71, %s87
      %p89 = scmp.eq.s32.totalorder %s19, 0
      %p90 = por %p88, %p89
      %p91 = scmp.le.s32.totalorder 1, %s13
      %p92 = scmp.lt.s32.totalorder %s13, 3
      %p93 = pnand %p91, %p92
      %p94 = pneg %p93
      // Predicated region
      $region9: #{tpu_custom_call.1} parent=5 // pred_check
        _
      $region10: #{tpu_custom_call.1} parent=5 // pred_check_branch
        %96 = sbr.rel (%p93) target = $region12
      $region11: #{tpu_custom_call.1} parent=5 // pred_region
        %s97 = ssub.s32 %s13, 1
      $region12: #{tpu_custom_call.1} parent=5 // pred_fallthru
        _
      %p98 = scmp.lt.s32.totalorder %s13, 2
      // Predicated region
      $region13: #{tpu_custom_call.1} parent=5 // pred_check
        %p99 = pneg %p98
      $region14: #{tpu_custom_call.1} parent=5 // pred_check_branch
        %101 = sbr.rel (%p99) target = $region16
      $region15: #{tpu_custom_call.1} parent=5 // pred_region
        // Predicated region
        $region17: #{tpu_custom_call.1} parent=15 // pred_check
          %p102 = pneg %p51
        $region18: #{tpu_custom_call.1} parent=15 // pred_check_branch
          %104 = sbr.rel (%p102) target = $region20
        $region19: #{tpu_custom_call.1} parent=15 // pred_region
          %s105 = sand.u32 %s41, 1
          %s106 = scalar_lea.sflag [#allocation4], %s105
          %s107 = sand.u32 %s41, 1
          %s108 = smul.addr %s107, 16
          %s109 = scalar_lea.vmem [#allocation3], %s108
          %s110 = sadd.s32 %s20, %s21
          %p111 = scmp.lt.s32.totalorder %s110, 0
          %s112 = scalar_select %p111, %s110, 0
          %s113 = smul.u32 2, %s112
          %115 = vsyncadd %s106, 0
          %s116 = smul.addr %s113, 8
          %s117 = scalar_lea.hbm %s0, %s116
          %s118 = sshll.u32 %s117, 4
          %s119 = int_to_ptr.hbm [resolvable:$true] %s118
          %s120 = sshll.u32 %s109, 4
          %s121 = int_to_ptr.vmem [resolvable:$true] %s120
          %126 = dma.hbm_to_vmem [thread:$0]  %s119, 256, %s121, %s106, 128, 128, 8
        $region20: #{tpu_custom_call.1} parent=15 // pred_fallthru
          _
      $region16: #{tpu_custom_call.1} parent=5 // pred_fallthru
        _
      %p127 = scmp.le.s32.totalorder 1, %s13
      %p128 = scmp.lt.s32.totalorder %s13, 3
      %p129 = pnand %p127, %p128
      %p130 = pneg %p129
      // Predicated region
      $region21: #{tpu_custom_call.1} parent=5 // pred_check
        _
      $region22: #{tpu_custom_call.1} parent=5 // pred_check_branch
        %132 = sbr.rel (%p129) target = $region24
      $region23: #{tpu_custom_call.1} parent=5 // pred_region
        %s133 = ssub.s32 %s13, 1
        %s134 = sand.u32 %s44, 1
        %s135 = scalar_lea.sflag [#allocation4], %s134
        %s136 = sand.u32 %s44, 1
        %s137 = smul.addr %s136, 16
        %s138 = scalar_lea.vmem [#allocation3], %s137
        // Predicated region
        $region25: #{tpu_custom_call.1} parent=23 // pred_check
          %p139 = pneg %p57
        $region26: #{tpu_custom_call.1} parent=23 // pred_check_branch
          %141 = sbr.rel (%p139) target = $region28
        $region27: #{tpu_custom_call.1} parent=23 // pred_region
          %143 = dma.done %s135, 256
        $region28: #{tpu_custom_call.1} parent=23 // pred_fallthru
          _
        %s144 = sand.u32 %s44, 1
        %s145 = scalar_lea.sflag [#allocation4], %s144
        %s146 = sand.u32 %s44, 1
        %s147 = smul.addr %s146, 16
        %s148 = scalar_lea.vmem [#allocation3], %s147
        %p149 = pneg %p57
        %p150 = pneg %p54
        %p151 = pneg %p83
        %p152 = pneg %p80
        %s153 = sand.u32 %s70, 1
        %s154 = scalar_lea.sflag [#allocation5], %s153
        %s155 = sand.u32 %s70, 1
        %s156 = smul.addr %s155, 8
        %s157 = scalar_lea.vmem [#allocation6], %s156
        %s158 = sadd.s32 %s22, %s23
        %p159 = scmp.lt.s32.totalorder %s158, 0
        %s160 = scalar_select %p159, %s158, 0
        %s161 = smul.u32 2, %s160
        %p162 = scmp.eq.s32.totalorder %s23, 0
        // Predicated region
        $region29: #{tpu_custom_call.1} parent=23 // pred_check
          %p163 = pneg %p162
        $region30: #{tpu_custom_call.1} parent=23 // pred_check_branch
          %165 = sbr.rel (%p163) target = $region32
        $region31: #{tpu_custom_call.1} parent=23 // pred_region
          %166 = vst [vmem:[#allocation2] sm:$0xff] 0.0
        $region32: #{tpu_custom_call.1} parent=23 // pred_fallthru
          _
        %v167 = vld [vmem:[%s138] sm:$0xff]
        %v168 = vld [vmem:[%s138 + $0x8] sm:$0xff]
        %s169 = sadd.s32 %s22, %s23
        %s170 = smul.u32 %s169, 16
        %v171 = vlaneseq
        %v172 = vshrl.u32 %v171, 7
        %v173 = vadd.s32 %v172, 8
        %v174 = vstv %s170
        %v175 = vadd.s32 %v174, %v172
        %v176 = vadd.s32 %v174, %v173
        %vm177 = vcmp.lt.s32.totalorder %v175, 16
        %vm178 = vcmp.lt.s32.totalorder %v176, 16
        %v179 = vsel %vm177, %v167, 0.0
        %v180 = vsel %vm178, %v168, 0.0
        %v181 = vmul.f32 %v179, %v179
        %v182 = vmul.f32 %v180, %v180
        %v183 = vld [vmem:[#allocation2] sm:$0xff]
        %v184 = vadd.f32 %v181, %v182
        %v185 = vadd.f32 %v183, %v184
        %186 = vst [vmem:[#allocation2] sm:$0xff] %v185
        // Predicated region
        $region33: #{tpu_custom_call.1} parent=23 // pred_check
          %p187 = pneg %p162
        $region34: #{tpu_custom_call.1} parent=23 // pred_check_branch
          %189 = sbr.rel (%p187) target = $region36
        $region35: #{tpu_custom_call.1} parent=23 // pred_region
          %v190 = vld [vmem:[#allocation2] sm:$0xff]
          %191 = vst [vmem:[%s157] sm:$0xff] %v190
        $region36: #{tpu_custom_call.1} parent=23 // pred_fallthru
          _
        %s192 = sand.u32 %s70, 1
        %s193 = scalar_lea.sflag [#allocation5], %s192
        %s194 = sand.u32 %s70, 1
        %s195 = smul.addr %s194, 8
        %s196 = scalar_lea.vmem [#allocation6], %s195
        // Predicated region
        $region37: #{tpu_custom_call.1} parent=23 // pred_check
          %p197 = pneg %p80
        $region38: #{tpu_custom_call.1} parent=23 // pred_check_branch
          %199 = sbr.rel (%p197) target = $region40
        $region39: #{tpu_custom_call.1} parent=23 // pred_region
          %201 = vsyncadd %s193, 0
          %s202 = smul.addr %s22, 8
          %s203 = scalar_lea.hbm %s1, %s202
          %s205 = sshll.u32 %s196, 4
          %s206 = int_to_ptr.vmem [resolvable:$true] %s205
          %s207 = sshll.u32 %s203, 4
          %s208 = int_to_ptr.hbm [resolvable:$true] %s207
          %210 = dma.vmem_to_hbm [thread:$0]  %s206, 128, %s208, %s193
        $region40: #{tpu_custom_call.1} parent=23 // pred_fallthru
          _
      $region24: #{tpu_custom_call.1} parent=5 // pred_fallthru
        _
      %p211 = scmp.le.s32.totalorder 2, %s13
      // Predicated region
      $region41: #{tpu_custom_call.1} parent=5 // pred_check
        %p212 = pneg %p211
      $region42: #{tpu_custom_call.1} parent=5 // pred_check_branch
        %214 = sbr.rel (%p212) target = $region44
      $region43: #{tpu_custom_call.1} parent=5 // pred_region
        %s215 = ssub.s32 %s13, 2
        // Predicated region
        $region45: #{tpu_custom_call.1} parent=43 // pred_check
          %p216 = pneg %p86
        $region46: #{tpu_custom_call.1} parent=43 // pred_check_branch
          %218 = sbr.rel (%p216) target = $region48
        $region47: #{tpu_custom_call.1} parent=43 // pred_region
          %s219 = sand.u32 %s71, 1
          %s220 = scalar_lea.sflag [#allocation5], %s219
          %s221 = sand.u32 %s71, 1
          %s222 = smul.addr %s221, 8
          %s223 = scalar_lea.vmem [#allocation6], %s222
          %225 = dma.done %s220, 128
        $region48: #{tpu_custom_call.1} parent=43 // pred_fallthru
          _
      $region44: #{tpu_custom_call.1} parent=5 // pred_fallthru
        _
    $region6: #{tpu_custom_call.1} parent=1 // loop_footer
      %s17 = sadd.s32 1, %s13
    $region7: #{tpu_custom_call.1} parent=1 // loop_footer_branch
      %12 = sbr.rel target = $region3
    $region8: #{tpu_custom_call.1} parent=1 // loop_exit
      _
    %226 = vsyncpa [#allocation4], 1
    %s227 = scalar_lea.sflag [#allocation4], 1
    %228 = vsyncpa %s227, 1
    %229 = vsyncpa [#allocation5], 1
    %s230 = scalar_lea.sflag [#allocation5], 1
    %231 = vsyncpa %s230, 1

</llo_original>
